<compile_context>
chip_gen: v7x
topology: tpu7x:2x2x1
jax: 0.10.0
libtpu: 0.0.40
codegen_flags: <defaults>
</compile_context>

<pallas_src>
import functools

import jax
import jax.numpy as jnp
from jax import lax
from jax.experimental import pallas as pl
from jax.experimental.pallas import tpu as pltpu


def _round_up(x: int, m: int) -> int:
    return (x + m - 1) // m * m


def _vmem_capacity_bytes(default: int = 64 * 1024 * 1024) -> int:
    """Physical VMEM of the attached TPU generation (fallback: v7x 64 MiB)."""
    try:
        info = pltpu.get_tpu_info()
        cap = getattr(info, "vmem_capacity_bytes", None)
        if cap:
            return int(cap)
    except Exception:
        pass
    return default


def _mlm_kernel(x_ref, w_ref, b_ref, o_ref, m_ref, l_ref, *,
                tile_vocab, num_vocab_tiles):
    """One (row-tile, vocab-tile) grid step of fused linear + log-softmax."""
    j = pl.program_id(1)

    @pl.when(j == 0)
    def _init():
        m_ref[...] = jnp.full_like(m_ref, -jnp.inf)
        l_ref[...] = jnp.zeros_like(l_ref)

    # logits tile: (TM, TV) = x (TM, H) @ weight_tile (TV, H)^T  (+ bias tile).
    # Contracting dim 1 of the (TV, H) tile keeps the nn.Linear layout and
    # lowers as a transposed-RHS MXU matmul (no per-tile XLU transpose).
    s = lax.dot_general(
        x_ref[...], w_ref[...],
        dimension_numbers=(((1,), (1,)), ((), ())),
        preferred_element_type=jnp.float32,
    )
    # Padded vocab columns: zero weight rows + (-1e30) bias -> exactly -1e30,
    # so no in-kernel mask is needed.
    s = s + b_ref[...].astype(jnp.float32)

    # Online log-sum-exp across vocab tiles (all f32).
    m_prev = m_ref[...]
    m_new = jnp.maximum(m_prev, jnp.max(s, axis=-1, keepdims=True))
    l_ref[...] = (l_ref[...] * jnp.exp(m_prev - m_new)
                  + jnp.sum(jnp.exp(s - m_new), axis=-1, keepdims=True))
    m_ref[...] = m_new

    # Stage the raw logits tile into the row-resident output block with a
    # single 128-aligned, lane-dense dynamic store.
    s_out = s.astype(o_ref.dtype)
    if num_vocab_tiles == 1:
        o_ref[...] = s_out
    else:
        col0 = pl.multiple_of(j * tile_vocab, 128)
        o_ref[:, pl.ds(col0, tile_vocab)] = s_out

    # Normalize the whole row block once, on the last vocab step.  The
    # subtraction runs in the output dtype (halves the tail traffic when
    # staging bf16 on v6e/v7x).
    @pl.when(j == num_vocab_tiles - 1)
    def _finalize():
        lse = (m_ref[...] + jnp.log(l_ref[...])).astype(o_ref.dtype)
        o_ref[...] = o_ref[...] - lse


def masked_language_model(x, weight, bias, *, tile_rows=512, tile_vocab=2048,
                          compute_dtype=jnp.bfloat16, out_dtype=None,
                          vmem_budget_bytes=None):
    """log_softmax(x @ weight.T + bias, axis=-1).

    x: (B, S, H); weight: (V, H) (nn.Linear layout); bias: (V,).
    Returns (B, S, V) in out_dtype (default: x.dtype).
    compute_dtype (default bf16) only affects the matmul inputs; accumulation
    and softmax math are always f32.  Pass compute_dtype=None to keep dtypes.
    """
    B, S, H = x.shape
    V, H_w = weight.shape
    assert H_w == H and bias.shape == (V,)
    rows = B * S
    out_dtype = jnp.dtype(x.dtype if out_dtype is None else out_dtype)

    if compute_dtype is not None:
        compute_dtype = jnp.dtype(compute_dtype)
        x = x.astype(compute_dtype)
        weight = weight.astype(compute_dtype)
    bias = bias.astype(jnp.float32)

    # ---- VMEM budget per TPU generation -------------------------------------
    if vmem_budget_bytes is None:
        vmem_budget_bytes = int(0.85 * _vmem_capacity_bytes())

    # ---- tiling -------------------------------------------------------------
    # Vocab tiles: lane-dense multiples of 128 (2048 default = MXU friendly).
    tv = min(_round_up(tile_vocab, 128), _round_up(V, 128))
    v_pad = _round_up(V, tv)
    num_vocab_tiles = v_pad // tv

    # Row tiles: multiples of 8, shrunk until double-buffered blocks fit VMEM.
    tm = min(_round_up(tile_rows, 8), _round_up(rows, 8))
    in_bytes = jnp.dtype(x.dtype).itemsize
    w_bytes = jnp.dtype(weight.dtype).itemsize
    o_bytes = out_dtype.itemsize

    def _vmem_estimate(tm_):
        per_buf = (tm_ * H * in_bytes        # x block
                   + tv * H * w_bytes        # weight block
                   + tv * 4                  # bias block
                   + tm_ * v_pad * o_bytes)  # row-resident output block
        return 2 * per_buf + 2 * tm_ * 4     # double-buffering + m/l scratch

    while tm > 8 and _vmem_estimate(tm) > vmem_budget_bytes:
        tm = max(8, _round_up(tm // 2, 8))

    # v7x megacore: make sure the "parallel" rows axis has >= 2 tiles so both
    # TensorCores get work (only matters for small row counts).
    if rows > 8 and _round_up(rows, tm) // tm < 2:
        tm = max(8, _round_up(pl.cdiv(rows, 2), 8))
    rows_pad = _round_up(rows, tm)

    vmem_limit = int(min(max(_vmem_estimate(tm) * 5 // 4, 32 * 1024 * 1024),
                         max(vmem_budget_bytes, 32 * 1024 * 1024)))

    # ---- pad operands once (outside the kernel) -----------------------------
    x2d = x.reshape(rows, H)
    if rows_pad != rows:
        x2d = jnp.pad(x2d, ((0, rows_pad - rows), (0, 0)))
    w_p = weight if v_pad == V else jnp.pad(weight, ((0, v_pad - V), (0, 0)))
    # Pad bias with -1e30: with zero weight rows this makes padded logits
    # exactly -1e30, replacing the per-step in-kernel mask.
    if v_pad == V:
        b_p = bias
    else:
        b_p = jnp.pad(bias, ((0, v_pad - V),), constant_values=-1e30)
    b2d = b_p.reshape(1, v_pad)

    kernel = functools.partial(
        _mlm_kernel, tile_vocab=tv, num_vocab_tiles=num_vocab_tiles)

    out2d = pl.pallas_call(
        kernel,
        out_shape=jax.ShapeDtypeStruct((rows_pad, v_pad), out_dtype),
        grid_spec=pltpu.PrefetchScalarGridSpec(
            num_scalar_prefetch=0,
            grid=(rows_pad // tm, num_vocab_tiles),
            in_specs=[
                pl.BlockSpec((tm, H), lambda i, j: (i, 0)),   # activations
                pl.BlockSpec((tv, H), lambda i, j: (j, 0)),   # weight tile (V,H) layout
                pl.BlockSpec((1, tv), lambda i, j: (0, j)),   # bias tile
            ],
            out_specs=pl.BlockSpec((tm, v_pad), lambda i, j: (i, 0)),
            scratch_shapes=[
                pltpu.VMEM((tm, 1), jnp.float32),   # running max
                pltpu.VMEM((tm, 1), jnp.float32),   # running sum-exp
            ],
        ),
        compiler_params=pltpu.CompilerParams(
            dimension_semantics=("parallel", "arbitrary"),
            vmem_limit_bytes=vmem_limit,
        ),
    )(x2d, w_p, b2d)

    # Only slice (extra XLA copy) when padding actually happened.
    if rows_pad != rows or v_pad != V:
        out2d = out2d[:rows, :V]
    return out2d.reshape(B, S, V)


if __name__ == "__main__":
    # Small shapes implied by the module; vocab deliberately NOT a multiple of
    # 128 to exercise the -1e30 bias-padding path.
    batch, seq, hidden, vocab = 2, 8, 32, 200

    key = jax.random.PRNGKey(0)
    kx, kw, kb = jax.random.split(key, 3)

    x = jax.random.normal(kx, (batch, seq, hidden), dtype=jnp.float32)
    bound = 1.0 / (hidden ** 0.5)   # nn.Linear default init range
    weight = jax.random.uniform(kw, (vocab, hidden), minval=-bound, maxval=bound,
                                dtype=jnp.float32)
    bias = jax.random.uniform(kb, (vocab,), minval=-bound, maxval=bound,
                              dtype=jnp.float32)

    ref = jax.nn.log_softmax(x @ weight.T + bias, axis=-1)

    # f32 path, multi-vocab-tile: online LSE across 2 tiles, -1e30 bias
    # padding, dynamic 128-aligned staging store, 2 row tiles (megacore).
    out = masked_language_model(x, weight, bias, tile_vocab=128,
                                compute_dtype=None)
    jax.block_until_ready(out)
    assert out.shape == (batch, seq, vocab)
    assert jnp.allclose(out, ref, atol=2e-5, rtol=2e-5)

    # f32 path, single vocab tile.
    out_single = masked_language_model(x, weight, bias, compute_dtype=None)
    jax.block_until_ready(out_single)
    assert jnp.allclose(out_single, ref, atol=2e-5, rtol=2e-5)

    # Default path: bf16 matmul inputs, f32 accumulation / softmax math.
    out_bf16 = masked_language_model(x, weight, bias)
    jax.block_until_ready(out_bf16)
    assert jnp.allclose(out_bf16, ref, atol=5e-2, rtol=5e-2)

    print("KERNEL_OK")
</pallas_src>

<mosaic_0001>
module attributes {stable_mosaic.version = 11 : i64} {
  func.func @_mlm_kernel(%arg0: i32, %arg1: i32, %arg2: memref<8x32xf32, #tpu.memory_space<vmem>>, %arg3: memref<128x32xf32, #tpu.memory_space<vmem>>, %arg4: memref<1x128xf32, #tpu.memory_space<vmem>>, %arg5: memref<8x256xf32, #tpu.memory_space<vmem>>, %arg6: memref<8x1xf32, #tpu.memory_space<vmem>>, %arg7: memref<8x1xf32, #tpu.memory_space<vmem>>) attributes {dimension_semantics = [#tpu.dimension_semantics<parallel>, #tpu.dimension_semantics<arbitrary>], iteration_bounds = array<i64: 2, 2>, scalar_prefetch = 0 : i64, scratch_operands = 2 : i64, tpu.core_type = #tpu.core_type<tc>, window_params = [{transform_indices = @transform_0, window_bounds = array<i64: 8, 32>}, {transform_indices = @transform_1, window_bounds = array<i64: 128, 32>}, {transform_indices = @transform_2, window_bounds = array<i64: 1, 128>}, {transform_indices = @transform_3, window_bounds = array<i64: 8, 256>}]} {
    %c0_i32 = arith.constant 0 : i32
    %0 = arith.cmpi eq, %arg1, %c0_i32 : i32
    %1 = arith.extui %0 : i1 to i32
    %c0_i32_0 = arith.constant 0 : i32
    %2 = arith.cmpi ne, %1, %c0_i32_0 : i32
    scf.if %2 {
      %cst_18 = arith.constant 0xFF800000 : f32
      %32 = vector.broadcast %cst_18 : f32 to vector<8x1xf32>
      %c0_19 = arith.constant 0 : index
      %c0_20 = arith.constant 0 : index
      %33 = vector.load %arg6[%c0_19, %c0_20] : memref<8x1xf32, #tpu.memory_space<vmem>>, vector<8x1xf32>
      tpu.vector_store %arg6[%c0_19, %c0_20], %32 {strides = array<i32>} : memref<8x1xf32, #tpu.memory_space<vmem>>, vector<8x1xf32>,
      %cst_21 = arith.constant 0.000000e+00 : f32
      %34 = vector.broadcast %cst_21 : f32 to vector<8x1xf32>
      %c0_22 = arith.constant 0 : index
      %c0_23 = arith.constant 0 : index
      %35 = vector.load %arg7[%c0_22, %c0_23] : memref<8x1xf32, #tpu.memory_space<vmem>>, vector<8x1xf32>
      tpu.vector_store %arg7[%c0_22, %c0_23], %34 {strides = array<i32>} : memref<8x1xf32, #tpu.memory_space<vmem>>, vector<8x1xf32>,
    } else {
    }
    %c0 = arith.constant 0 : index
    %c0_1 = arith.constant 0 : index
    %3 = vector.load %arg2[%c0, %c0_1] : memref<8x32xf32, #tpu.memory_space<vmem>>, vector<8x32xf32>
    %c0_2 = arith.constant 0 : index
    %c0_3 = arith.constant 0 : index
    %4 = vector.load %arg3[%c0_2, %c0_3] : memref<128x32xf32, #tpu.memory_space<vmem>>, vector<128x32xf32>
    %cst = arith.constant dense<0.000000e+00> : vector<8x128xf32>
    %5 = tpu.matmul %3, %4, %cst {dimension_numbers = #tpu.dot_dimension_numbers<[1], [1], [0], [0], [0, 0, 1, 0], [], []>} : vector<8x32xf32>, vector<128x32xf32>, vector<8x128xf32> -> vector<8x128xf32>
    %c0_4 = arith.constant 0 : index
    %c0_5 = arith.constant 0 : index
    %6 = vector.load %arg4[%c0_4, %c0_5] : memref<1x128xf32, #tpu.memory_space<vmem>>, vector<1x128xf32>
    %7 = vector.broadcast %6 : vector<1x128xf32> to vector<8x128xf32>
    %8 = arith.addf %5, %7 : vector<8x128xf32>
    %c0_6 = arith.constant 0 : index
    %c0_7 = arith.constant 0 : index
    %9 = vector.load %arg6[%c0_6, %c0_7] : memref<8x1xf32, #tpu.memory_space<vmem>>, vector<8x1xf32>
    %cst_8 = arith.constant dense<0xFF800000> : vector<8xf32>
    %10 = vector.multi_reduction <maximumf>, %8, %cst_8 [1] : vector<8x128xf32> to vector<8xf32>
    %11 = vector.shape_cast %10 : vector<8xf32> to vector<8x1xf32>
    %12 = arith.maximumf %9, %11 : vector<8x1xf32>
    %c0_9 = arith.constant 0 : index
    %c0_10 = arith.constant 0 : index
    %13 = vector.load %arg7[%c0_9, %c0_10] : memref<8x1xf32, #tpu.memory_space<vmem>>, vector<8x1xf32>
    %14 = arith.subf %9, %12 : vector<8x1xf32>
    %15 = math.exp %14 : vector<8x1xf32>
    %16 = arith.mulf %13, %15 : vector<8x1xf32>
    %17 = vector.broadcast %12 : vector<8x1xf32> to vector<8x128xf32>
    %18 = arith.subf %8, %17 : vector<8x128xf32>
    %19 = math.exp %18 : vector<8x128xf32>
    %cst_11 = arith.constant dense<0.000000e+00> : vector<8xf32>
    %20 = vector.multi_reduction <add>, %19, %cst_11 [1] : vector<8x128xf32> to vector<8xf32>
    %21 = vector.shape_cast %20 : vector<8xf32> to vector<8x1xf32>
    %22 = arith.addf %16, %21 : vector<8x1xf32>
    %c0_12 = arith.constant 0 : index
    %c0_13 = arith.constant 0 : index
    %23 = vector.load %arg7[%c0_12, %c0_13] : memref<8x1xf32, #tpu.memory_space<vmem>>, vector<8x1xf32>
    tpu.vector_store %arg7[%c0_12, %c0_13], %22 {strides = array<i32>} : memref<8x1xf32, #tpu.memory_space<vmem>>, vector<8x1xf32>,
    %c0_14 = arith.constant 0 : index
    %c0_15 = arith.constant 0 : index
    %24 = vector.load %arg6[%c0_14, %c0_15] : memref<8x1xf32, #tpu.memory_space<vmem>>, vector<8x1xf32>
    tpu.vector_store %arg6[%c0_14, %c0_15], %12 {strides = array<i32>} : memref<8x1xf32, #tpu.memory_space<vmem>>, vector<8x1xf32>,
    %c128_i32 = arith.constant 128 : i32
    %25 = arith.muli %arg1, %c128_i32 : i32
    %26 = tpu.assume_multiple %25, 128 : i32
    %c0_16 = arith.constant 0 : index
    %27 = arith.index_cast %26 : i32 to index
    %28 = vector.load %arg5[%c0_16, %27] : memref<8x256xf32, #tpu.memory_space<vmem>>, vector<8x128xf32>
    tpu.vector_store %arg5[%c0_16, %27], %8 {strides = array<i32>} : memref<8x256xf32, #tpu.memory_space<vmem>>, vector<8x128xf32>,
    %c1_i32 = arith.constant 1 : i32
    %29 = arith.cmpi eq, %arg1, %c1_i32 : i32
    %30 = arith.extui %29 : i1 to i32
    %c0_i32_17 = arith.constant 0 : i32
    %31 = arith.cmpi ne, %30, %c0_i32_17 : i32
    scf.if %31 {
      %c0_18 = arith.constant 0 : index
      %c0_19 = arith.constant 0 : index
      %32 = vector.load %arg6[%c0_18, %c0_19] : memref<8x1xf32, #tpu.memory_space<vmem>>, vector<8x1xf32>
      %c0_20 = arith.constant 0 : index
      %c0_21 = arith.constant 0 : index
      %33 = vector.load %arg7[%c0_20, %c0_21] : memref<8x1xf32, #tpu.memory_space<vmem>>, vector<8x1xf32>
      %34 = math.log %33 : vector<8x1xf32>
      %35 = arith.addf %32, %34 : vector<8x1xf32>
      %c0_22 = arith.constant 0 : index
      %c0_23 = arith.constant 0 : index
      %36 = vector.load %arg5[%c0_22, %c0_23] : memref<8x256xf32, #tpu.memory_space<vmem>>, vector<8x256xf32>
      %37 = vector.broadcast %35 : vector<8x1xf32> to vector<8x256xf32>
      %38 = arith.subf %36, %37 : vector<8x256xf32>
      %c0_24 = arith.constant 0 : index
      %c0_25 = arith.constant 0 : index
      %39 = vector.load %arg5[%c0_24, %c0_25] : memref<8x256xf32, #tpu.memory_space<vmem>>, vector<8x256xf32>
      tpu.vector_store %arg5[%c0_24, %c0_25], %38 {strides = array<i32>} : memref<8x256xf32, #tpu.memory_space<vmem>>, vector<8x256xf32>,
    } else {
    }
    return
  }
  func.func @transform_0(%arg0: i32, %arg1: i32) -> (i32, i32) {
    %c0_i32 = arith.constant 0 : i32
    %c0_i32_0 = arith.constant 0 : i32
    return %arg0, %c0_i32 : i32, i32
  }
  func.func @transform_1(%arg0: i32, %arg1: i32) -> (i32, i32) {
    %c0_i32 = arith.constant 0 : i32
    %c0_i32_0 = arith.constant 0 : i32
    return %arg1, %c0_i32 : i32, i32
  }
  func.func @transform_2(%arg0: i32, %arg1: i32) -> (i32, i32) {
    %c0_i32 = arith.constant 0 : i32
    %c0_i32_0 = arith.constant 0 : i32
    return %c0_i32, %arg1 : i32, i32
  }
  func.func @transform_3(%arg0: i32, %arg1: i32) -> (i32, i32) {
    %c0_i32 = arith.constant 0 : i32
    %c0_i32_0 = arith.constant 0 : i32
    return %arg0, %c0_i32 : i32, i32
  }
}

</mosaic_0001>

<llo_original>
// kernel: tpu_custom_call.1
$region0: #{tpu_custom_call.1}
  #allocation0 [shape = 'u32[]', space=smem, size = 0x4, offset = 0x4, fixed_abs, tag = 'smem constant byte address 0x4 - core index']
  #allocation1 [shape = 'u32[144,128]{1,0:T(1,128)}', space=vmem, size = 0x12000, scoped, tag = 'internal scratch']
  #allocation2 [shape = 'f32[8,1]{1,0:T(8,128)}', space=vmem, size = 0x1000, scoped, tag = 'scratch operand']
  #allocation3 [shape = 'f32[8,1]{1,0:T(8,128)}', space=vmem, size = 0x1000, scoped, tag = 'scratch operand']
  %s0 = inlined_call_operand.vmem [shape: f32[16,32], index: 0, kind: input, shape index: {}]
  %s1 = inlined_call_operand.vmem [shape: f32[256,32], index: 1, kind: input, shape index: {}]
  %s2 = inlined_call_operand.vmem [shape: f32[1,256], index: 2, kind: input, shape index: {}]
  %s3 = inlined_call_operand.hbm [shape: f32[16,256], index: 3, kind: output, shape index: {}]
  %s4 = sld [smem:[#allocation0]]
  $region53: #{tpu_custom_call.1} parent=0
    _
  %s6 = ssub.s32 1, %s4
  %s7 = scalar_select 0, %s6, %s4
  $region1: #{tpu_custom_call.1} parent=0
    #allocation4 [shape = 'u8[16384]{0}', space=vmem, size = 0x4000, scoped, tag = 'output window, operand 0']
    #allocation5 [shape = 's32[2]{0}', space=sflag, size = 0x8, scoped, tag = 'scoped memory for tpu_custom_call.1']
    %8 = vsyncpa [#allocation5], 0
    %s9 = scalar_lea.sflag [#allocation5], 1
    %10 = vsyncpa %s9, 0
    loop: start=0, step=1, limit=6
    $region2: #{tpu_custom_call.1} parent=1 // loop_pre_header
      _
    $region3: #{tpu_custom_call.1} parent=1 // loop_header
      %s12 = sphi 0, %s16
      %p13 = scmp.ge.s32.totalorder %s12, 6
      %s19 = sphi 0, %s31
      %s20 = sphi 0, %s27
      %s21 = sphi 0, %s19
      %s22 = sphi 0, %s20
      %s23 = sphi 0, %s21
      %s24 = sphi 0, %s22
      %s34 = sphi 0, %s36
      %s37 = sphi 0, %s34
      %s38 = sphi 0, %s37
      %s54 = sphi 0, %s38
      %s60 = sphi 0, %s62
      %s63 = sphi 0, %s60
      %s64 = sphi 0, %s63
      %s80 = sphi 0, %s64
      %s86 = sphi 0, %s88
      %s89 = sphi 0, %s86
      %s90 = sphi 0, %s89
      %s106 = sphi 0, %s90
      %s112 = sphi 0, %s114
      %s115 = sphi 0, %s112
      %s116 = sphi 0, %s115
      %s132 = sphi 0, %s116
    $region4: #{tpu_custom_call.1} parent=1 // loop_header_branch
      %15 = sbr.rel (%p13) target = $region8
    $region5: #{tpu_custom_call.1} parent=1 // loop_body
      %s17 = ssub.s32 %s12, 1
      %s18 = ssub.s32 %s12, 2
      %s25 = sadd.s32 1, %s20
      %p26 = scmp.ge.s32.totalorder %s25, 2
      %s27 = scalar_select %p26, 0, %s25
      %s28 = sadd.s32 1, %s19
      %s29 = scalar_select %p26, %s28, %s19
      %p30 = scmp.ge.s32.totalorder %s29, 2
      %s31 = scalar_select %p30, 0, %s29
      %s32 = ssub.s32 %s19, %s31
      %p33 = scmp.eq.s32.totalorder %s32, 0
      %s35 = sadd.s32 %s34, 1
      %s36 = scalar_select %p33, %s34, %s35
      %p39 = pneg %p33
      %p40 = scmp.eq.s32.totalorder %s12, 3
      %p41 = por %p39, %p40
      %p42 = scmp.ne.s32.totalorder %s34, %s37
      %p43 = scmp.eq.s32.totalorder %s12, 0
      %p44 = por %p42, %p43
      %p45 = scmp.ne.s32.totalorder %s34, %s37
      %p46 = scmp.eq.s32.totalorder %s17, 3
      %p47 = por %p45, %p46
      %p48 = scmp.ne.s32.totalorder %s37, %s38
      %p49 = scmp.eq.s32.totalorder %s17, 0
      %p50 = por %p48, %p49
      %p51 = scmp.ne.s32.totalorder %s37, %s38
      %p52 = scmp.eq.s32.totalorder %s18, 3
      %p53 = por %p51, %p52
      %p55 = scmp.ne.s32.totalorder %s38, %s54
      %p56 = scmp.eq.s32.totalorder %s18, 0
      %p57 = por %p55, %p56
      %s58 = ssub.s32 %s20, %s27
      %p59 = scmp.eq.s32.totalorder %s58, 0
      %s61 = sadd.s32 %s60, 1
      %s62 = scalar_select %p59, %s60, %s61
      %p65 = pneg %p59
      %p66 = scmp.eq.s32.totalorder %s12, 3
      %p67 = por %p65, %p66
      %p68 = scmp.ne.s32.totalorder %s60, %s63
      %p69 = scmp.eq.s32.totalorder %s12, 0
      %p70 = por %p68, %p69
      %p71 = scmp.ne.s32.totalorder %s60, %s63
      %p72 = scmp.eq.s32.totalorder %s17, 3
      %p73 = por %p71, %p72
      %p74 = scmp.ne.s32.totalorder %s63, %s64
      %p75 = scmp.eq.s32.totalorder %s17, 0
      %p76 = por %p74, %p75
      %p77 = scmp.ne.s32.totalorder %s63, %s64
      %p78 = scmp.eq.s32.totalorder %s18, 3
      %p79 = por %p77, %p78
      %p81 = scmp.ne.s32.totalorder %s64, %s80
      %p82 = scmp.eq.s32.totalorder %s18, 0
      %p83 = por %p81, %p82
      %s84 = ssub.s32 %s20, %s27
      %p85 = scmp.eq.s32.totalorder %s84, 0
      %s87 = sadd.s32 %s86, 1
      %s88 = scalar_select %p85, %s86, %s87
      %p91 = pneg %p85
      %p92 = scmp.eq.s32.totalorder %s12, 3
      %p93 = por %p91, %p92
      %p94 = scmp.ne.s32.totalorder %s86, %s89
      %p95 = scmp.eq.s32.totalorder %s12, 0
      %p96 = por %p94, %p95
      %p97 = scmp.ne.s32.totalorder %s86, %s89
      %p98 = scmp.eq.s32.totalorder %s17, 3
      %p99 = por %p97, %p98
      %p100 = scmp.ne.s32.totalorder %s89, %s90
      %p101 = scmp.eq.s32.totalorder %s17, 0
      %p102 = por %p100, %p101
      %p103 = scmp.ne.s32.totalorder %s89, %s90
      %p104 = scmp.eq.s32.totalorder %s18, 3
      %p105 = por %p103, %p104
      %p107 = scmp.ne.s32.totalorder %s90, %s106
      %p108 = scmp.eq.s32.totalorder %s18, 0
      %p109 = por %p107, %p108
      %s110 = ssub.s32 %s19, %s31
      %p111 = scmp.eq.s32.totalorder %s110, 0
      %s113 = sadd.s32 %s112, 1
      %s114 = scalar_select %p111, %s112, %s113
      %p117 = pneg %p111
      %p118 = scmp.eq.s32.totalorder %s12, 3
      %p119 = por %p117, %p118
      %p120 = scmp.ne.s32.totalorder %s112, %s115
      %p121 = scmp.eq.s32.totalorder %s12, 0
      %p122 = por %p120, %p121
      %p123 = scmp.ne.s32.totalorder %s112, %s115
      %p124 = scmp.eq.s32.totalorder %s17, 3
      %p125 = por %p123, %p124
      %p126 = scmp.ne.s32.totalorder %s115, %s116
      %p127 = scmp.eq.s32.totalorder %s17, 0
      %p128 = por %p126, %p127
      %p129 = scmp.ne.s32.totalorder %s115, %s116
      %p130 = scmp.eq.s32.totalorder %s18, 3
      %p131 = por %p129, %p130
      %p133 = scmp.ne.s32.totalorder %s116, %s132
      %p134 = scmp.eq.s32.totalorder %s18, 0
      %p135 = por %p133, %p134
      %p136 = scmp.le.s32.totalorder 1, %s12
      %p137 = scmp.lt.s32.totalorder %s12, 5
      %p138 = pnand %p136, %p137
      %p139 = pneg %p138
      // Predicated region
      $region9: #{tpu_custom_call.1} parent=5 // pred_check
        _
      $region10: #{tpu_custom_call.1} parent=5 // pred_check_branch
        %141 = sbr.rel (%p138) target = $region12
      $region11: #{tpu_custom_call.1} parent=5 // pred_region
        %s142 = ssub.s32 %s12, 1
      $region12: #{tpu_custom_call.1} parent=5 // pred_fallthru
        _
      %p143 = scmp.lt.s32.totalorder %s12, 4
      // Predicated region
      $region13: #{tpu_custom_call.1} parent=5 // pred_check
        %p144 = pneg %p143
      $region14: #{tpu_custom_call.1} parent=5 // pred_check_branch
        %146 = sbr.rel (%p144) target = $region16
      $region15: #{tpu_custom_call.1} parent=5 // pred_region
        // Predicated region
        $region17: #{tpu_custom_call.1} parent=15 // pred_check
          %p147 = pneg %p44
        $region18: #{tpu_custom_call.1} parent=15 // pred_check_branch
          %149 = sbr.rel (%p147) target = $region20
        $region19: #{tpu_custom_call.1} parent=15 // pred_region
          %p150 = scmp.lt.s32.totalorder %s19, 1
          %s151 = scalar_select %p150, %s19, 1
          %s152 = smul.addr %s151, 8
          %s153 = scalar_lea.vmem %s0, %s152
        $region20: #{tpu_custom_call.1} parent=15 // pred_fallthru
          _
        // Predicated region
        $region21: #{tpu_custom_call.1} parent=15 // pred_check
          %p154 = pneg %p70
        $region22: #{tpu_custom_call.1} parent=15 // pred_check_branch
          %156 = sbr.rel (%p154) target = $region24
        $region23: #{tpu_custom_call.1} parent=15 // pred_region
          %s157 = smul.u32 16, %s20
          %p158 = scmp.lt.s32.totalorder %s157, 31
          %s159 = scalar_select %p158, %s157, 31
          %s160 = smul.addr %s159, 8
          %s161 = scalar_lea.vmem %s1, %s160
          %s162 = smul.u32 16, %s20
        $region24: #{tpu_custom_call.1} parent=15 // pred_fallthru
          _
        // Predicated region
        $region25: #{tpu_custom_call.1} parent=15 // pred_check
          %p163 = pneg %p96
        $region26: #{tpu_custom_call.1} parent=15 // pred_check_branch
          %165 = sbr.rel (%p163) target = $region28
        $region27: #{tpu_custom_call.1} parent=15 // pred_region
          %p166 = scmp.lt.s32.totalorder %s20, 1
          %s167 = scalar_select %p166, %s20, 1
          %s168 = scalar_lea.vmem %s2, %s167
        $region28: #{tpu_custom_call.1} parent=15 // pred_fallthru
          _
      $region16: #{tpu_custom_call.1} parent=5 // pred_fallthru
        _
      %p169 = scmp.le.s32.totalorder 1, %s12
      %p170 = scmp.lt.s32.totalorder %s12, 5
      %p171 = pnand %p169, %p170
      %p172 = pneg %p171
      // Predicated region
      $region29: #{tpu_custom_call.1} parent=5 // pred_check
        _
      $region30: #{tpu_custom_call.1} parent=5 // pred_check_branch
        %174 = sbr.rel (%p171) target = $region32
      $region31: #{tpu_custom_call.1} parent=5 // pred_region
        %s175 = ssub.s32 %s12, 1
        %p176 = scmp.lt.s32.totalorder %s21, 1
        %s177 = scalar_select %p176, %s21, 1
        %s178 = smul.addr %s177, 8
        %s179 = scalar_lea.vmem %s0, %s178
        %p180 = pneg %p50
        %p181 = pneg %p47
        %s182 = smul.u32 16, %s22
        %p183 = scmp.lt.s32.totalorder %s182, 31
        %s184 = scalar_select %p183, %s182, 31
        %s185 = smul.addr %s184, 8
        %s186 = scalar_lea.vmem %s1, %s185
        %p187 = pneg %p76
        %p188 = pneg %p73
        %p189 = scmp.lt.s32.totalorder %s22, 1
        %s190 = scalar_select %p189, %s22, 1
        %s191 = scalar_lea.vmem %s2, %s190
        %p192 = pneg %p102
        %p193 = pneg %p99
        %p194 = pneg %p128
        %p195 = pneg %p125
        %s196 = sand.u32 %s115, 1
        %s197 = scalar_lea.sflag [#allocation5], %s196
        %s198 = sand.u32 %s115, 1
        %s199 = smul.addr %s198, 16
        %s200 = scalar_lea.vmem [#allocation4], %s199
        %p201 = scmp.lt.s32.totalorder %s21, 1
        %s202 = scalar_select %p201, %s21, 1
        %s203 = smul.addr %s202, 8
        %s204 = scalar_lea.vmem %s0, %s203
        %s205 = smul.u32 16, %s22
        %p206 = scmp.lt.s32.totalorder %s205, 31
        %s207 = scalar_select %p206, %s205, 31
        %s208 = smul.addr %s207, 8
        %s209 = scalar_lea.vmem %s1, %s208
        %s210 = smul.u32 16, %s22
        %p211 = scmp.lt.s32.totalorder %s22, 1
        %s212 = scalar_select %p211, %s22, 1
        %s213 = scalar_lea.vmem %s2, %s212
        %p214 = scmp.eq.s32.totalorder %s22, 0
        // Predicated region
        $region33: #{tpu_custom_call.1} parent=31 // pred_check
          %p215 = pneg %p214
        $region34: #{tpu_custom_call.1} parent=31 // pred_check_branch
          %217 = sbr.rel (%p215) target = $region36
        $region35: #{tpu_custom_call.1} parent=31 // pred_region
          %vm218 = vcmask 7168
          %219 = vst.msk [vmem:[#allocation2] sm:$0xff] %vm218, -inf
          %220 = vst.msk [vmem:[#allocation3] sm:$0xff] %vm218, 0.0
        $region36: #{tpu_custom_call.1} parent=31 // pred_fallthru
          _
        %v221 = vld [vmem:[%s204] sm:$0xff]
        %v222 = vld [vmem:[%s209] sm:$0xff]
        %v223 = vld [vmem:[%s209 + $0x8] sm:$0xff]
        %v224 = vld [vmem:[%s209 + $0x10] sm:$0xff]
        %v225 = vld [vmem:[%s209 + $0x18] sm:$0xff]
        %v226 = vld [vmem:[%s209 + $0x20] sm:$0xff]
        %v227 = vld [vmem:[%s209 + $0x28] sm:$0xff]
        %v228 = vld [vmem:[%s209 + $0x30] sm:$0xff]
        %v229 = vld [vmem:[%s209 + $0x38] sm:$0xff]
        %v230 = vld [vmem:[%s209 + $0x40] sm:$0xff]
        %v231 = vld [vmem:[%s209 + $0x48] sm:$0xff]
        %v232 = vld [vmem:[%s209 + $0x50] sm:$0xff]
        %v233 = vld [vmem:[%s209 + $0x58] sm:$0xff]
        %v234 = vld [vmem:[%s209 + $0x60] sm:$0xff]
        %v235 = vld [vmem:[%s209 + $0x68] sm:$0xff]
        %v236 = vld [vmem:[%s209 + $0x70] sm:$0xff]
        %v237 = vld [vmem:[%s209 + $0x78] sm:$0xff]
        %v238 = vld [vmem:[%s213] sm:$0x1]
        %v240 = vlaneseq
        %v241 = vshrl.u32 %v240, 7
        %v242 = vsub.s32 0, %v241
        %v243 = vrot.slane %v238, %v242
        %vm245 = vcmask 261120
        %v247 = vsel %vm245, %v221, 0
        %v250 = vsel %vm245, %v222, 0
        %v253 = vsel %vm245, %v223, 0
        %v256 = vsel %vm245, %v224, 0
        %v259 = vsel %vm245, %v225, 0
        %v262 = vsel %vm245, %v226, 0
        %v265 = vsel %vm245, %v227, 0
        %v268 = vsel %vm245, %v228, 0
        %v271 = vsel %vm245, %v229, 0
        %v274 = vsel %vm245, %v230, 0
        %v277 = vsel %vm245, %v231, 0
        %v280 = vsel %vm245, %v232, 0
        %v283 = vsel %vm245, %v233, 0
        %v286 = vsel %vm245, %v234, 0
        %v289 = vsel %vm245, %v235, 0
        %v292 = vsel %vm245, %v236, 0
        %v295 = vsel %vm245, %v237, 0
        %297 = vmatprep.subr.mxu0 0.0
        %298 = vmatpush1.xpose.msra.mxu0 %v250
        %299 = vmatprep.subr.mxu0 0.0
        %300 = vmatpush1.xpose.msra.mxu0 %v253
        %301 = vmatprep.subr.mxu0 0.0
        %302 = vmatpush1.xpose.msra.mxu0 %v256
        %303 = vmatprep.subr.mxu0 0.0
        %304 = vmatpush1.xpose.msra.mxu0 %v259
        %305 = vmatprep.subr.mxu0 0.0
        %306 = vmatpush1.xpose.msra.mxu0 %v262
        %307 = vmatprep.subr.mxu0 0.0
        %308 = vmatpush1.xpose.msra.mxu0 %v265
        %309 = vmatprep.subr.mxu0 0.0
        %310 = vmatpush1.xpose.msra.mxu0 %v268
        %311 = vmatprep.subr.mxu0 0.0
        %312 = vmatpush1.xpose.msra.mxu0 %v271
        %313 = vmatprep.subr.mxu0 0.0
        %314 = vmatpush1.xpose.msra.mxu0 %v274
        %315 = vmatprep.subr.mxu0 0.0
        %316 = vmatpush1.xpose.msra.mxu0 %v277
        %317 = vmatprep.subr.mxu0 0.0
        %318 = vmatpush1.xpose.msra.mxu0 %v280
        %319 = vmatprep.subr.mxu0 0.0
        %320 = vmatpush1.xpose.msra.mxu0 %v283
        %321 = vmatprep.subr.mxu0 0.0
        %322 = vmatpush1.xpose.msra.mxu0 %v286
        %323 = vmatprep.subr.mxu0 0.0
        %324 = vmatpush1.xpose.msra.mxu0 %v289
        %325 = vmatprep.subr.mxu0 0.0
        %326 = vmatpush1.xpose.msra.mxu0 %v292
        %327 = vmatprep.subr.mxu0 0.0
        %328 = vmatpush1.xpose.msra.mxu0 %v295
        %329 = vmatprep.subr.mxu0 0.0
        %330 = vmatpush1.xpose.msra.mxu0 0.0
        %331 = vmatprep.subr.mxu0 0.0
        %332 = vmatpush1.xpose.msra.mxu0 0.0
        %333 = vmatprep.subr.mxu0 0.0
        %334 = vmatpush1.xpose.msra.mxu0 0.0
        %335 = vmatprep.subr.mxu0 0.0
        %336 = vmatpush1.xpose.msra.mxu0 0.0
        %337 = vmatprep.subr.mxu0 0.0
        %338 = vmatpush1.xpose.msra.mxu0 0.0
        %339 = vmatprep.subr.mxu0 0.0
        %340 = vmatpush1.xpose.msra.mxu0 0.0
        %341 = vmatprep.subr.mxu0 0.0
        %342 = vmatpush1.xpose.msra.mxu0 0.0
        %343 = vmatprep.subr.mxu0 0.0
        %344 = vmatpush1.xpose.msra.mxu0 0.0
        %345 = vmatprep.subr.mxu0 0.0
        %346 = vmatpush1.xpose.msra.mxu0 0.0
        %347 = vmatprep.subr.mxu0 0.0
        %348 = vmatpush1.xpose.msra.mxu0 0.0
        %349 = vmatprep.subr.mxu0 0.0
        %350 = vmatpush1.xpose.msra.mxu0 0.0
        %351 = vmatprep.subr.mxu0 0.0
        %352 = vmatpush1.xpose.msra.mxu0 0.0
        %353 = vmatprep.subr.mxu0 0.0
        %354 = vmatpush1.xpose.msra.mxu0 0.0
        %355 = vmatprep.subr.mxu0 0.0
        %356 = vmatpush1.xpose.msra.mxu0 0.0
        %357 = vmatprep.subr.mxu0 0.0
        %358 = vmatpush1.xpose.msra.mxu0 0.0
        %359 = vmatprep.subr.mxu0 0.0
        %360 = vmatpush1.xpose.msra.mxu0 0.0
        %361 = vmatprep.mubr.f32.mxu0 0.0
        %362 = vmatmul.mubr.f32.gmra.mrb[0].mxu0 %v247
        %v363 = vpop.f32.mrb[0].mxu0
        %v364 = vadd.f32 %v243, %v363
        %v365 = vpop.f32.mrb[0].mxu0
        %366 = vdwg.mxu0
        %v367 = vld [vmem:[#allocation2] sm:$0xff]
        %368 = vmax.xlane.f32.xlu0 %v364
        %v369 = vpop.xlane.xlu0 %368
        %v370 = vmax.f32 %v367, %v369
        %v371 = vld [vmem:[#allocation3] sm:$0xff]
        %v372 = vsub.f32 %v367, %v370
        %v373 = vmul.f32 %v372, 1.442695
        %v374 = vpow.pop %v373
        %v375 = vmul.f32 %v371, %v374
        %377 = vset.pattern.permute.xlu0 0
        %378 = vperm.xlu0 %377, %v370
        %v379 = vpop.permute.xlu0 %378
        %v381 = vsub.f32 %v364, %v379
        %v382 = vmul.f32 %v381, 1.442695
        %v383 = vpow.pop %v382
        %384 = vadd.xlane.f32.xlu0 %v383
        %v385 = vpop.xlane.xlu0 %384
        %v386 = vadd.f32 %v375, %v385
        %vm387 = vcmask 7168
        %388 = vst.msk [vmem:[#allocation3] sm:$0xff] %vm387, %v386
        %389 = vst.msk [vmem:[#allocation2] sm:$0xff] %vm387, %v370
        %s390 = smul.u32 %s22, 128
        %s391 = sshra.s32 %s390, 7
        %s392 = sand.u32 %s390, 127
        %s393 = smul.addr %s391, 8
        %s394 = scalar_lea.vmem %s200, %s393 [#allocation4]
        %395 = vst [vmem:[%s394] sm:$0xff] %v364
        %p396 = scmp.eq.s32.totalorder %s22, 1
        // Predicated region
        $region37: #{tpu_custom_call.1} parent=31 // pred_check
          %p397 = pneg %p396
        $region38: #{tpu_custom_call.1} parent=31 // pred_check_branch
          %399 = sbr.rel (%p397) target = $region40
        $region39: #{tpu_custom_call.1} parent=31 // pred_region
          %v400 = vld [vmem:[#allocation2] sm:$0xff]
          %v401 = vld [vmem:[#allocation3] sm:$0xff]
          %v402 = vlog2.pop %v401
          %v403 = vmul.f32 %v402, 0.6931472
          %v404 = vadd.f32 %v400, %v403
          %v405 = vld [vmem:[%s200] sm:$0xff]
          %v406 = vld [vmem:[%s200 + $0x8] sm:$0xff]
          %408 = vset.pattern.permute.xlu0 0
          %409 = vperm.xlu0 %408, %v404
          %v410 = vpop.permute.xlu0 %409
          %v412 = vsub.f32 %v405, %v410
          %v413 = vsub.f32 %v406, %v410
          %414 = vst [vmem:[%s200] sm:$0xff] %v412
          %415 = vst [vmem:[%s200 + $0x8] sm:$0xff] %v413
        $region40: #{tpu_custom_call.1} parent=31 // pred_fallthru
          _
        %s416 = sand.u32 %s115, 1
        %s417 = scalar_lea.sflag [#allocation5], %s416
        %s418 = sand.u32 %s115, 1
        %s419 = smul.addr %s418, 16
        %s420 = scalar_lea.vmem [#allocation4], %s419
        // Predicated region
        $region41: #{tpu_custom_call.1} parent=31 // pred_check
          %p421 = pneg %p125
        $region42: #{tpu_custom_call.1} parent=31 // pred_check_branch
          %423 = sbr.rel (%p421) target = $region44
        $region43: #{tpu_custom_call.1} parent=31 // pred_region
          %s425 = ssub.s32 256, 256
          %426 = vsyncadd %s417, %s425
          %s427 = smul.addr %s21, 2
          %s428 = smul.addr %s427, 128
          %s429 = scalar_lea.hbm %s3, %s428
          %s431 = sshll.u32 %s420, 4
          %s432 = int_to_ptr.vmem [resolvable:$true] %s431
          %434 = dma.vmem_to_hbm [thread:$0]  %s432, 256, %s429, %s417
        $region44: #{tpu_custom_call.1} parent=31 // pred_fallthru
          _
      $region32: #{tpu_custom_call.1} parent=5 // pred_fallthru
        _
      %p435 = scmp.le.s32.totalorder 2, %s12
      // Predicated region
      $region45: #{tpu_custom_call.1} parent=5 // pred_check
        %p436 = pneg %p435
      $region46: #{tpu_custom_call.1} parent=5 // pred_check_branch
        %438 = sbr.rel (%p436) target = $region48
      $region47: #{tpu_custom_call.1} parent=5 // pred_region
        %s439 = ssub.s32 %s12, 2
        // Predicated region
        $region49: #{tpu_custom_call.1} parent=47 // pred_check
          %p440 = pneg %p131
        $region50: #{tpu_custom_call.1} parent=47 // pred_check_branch
          %442 = sbr.rel (%p440) target = $region52
        $region51: #{tpu_custom_call.1} parent=47 // pred_region
          %s443 = sand.u32 %s116, 1
          %s444 = scalar_lea.sflag [#allocation5], %s443
          %s445 = sand.u32 %s116, 1
          %s446 = smul.addr %s445, 16
          %s447 = scalar_lea.vmem [#allocation4], %s446
          %448 = dma.done %s444, 256
        $region52: #{tpu_custom_call.1} parent=47 // pred_fallthru
          _
      $region48: #{tpu_custom_call.1} parent=5 // pred_fallthru
        _
    $region6: #{tpu_custom_call.1} parent=1 // loop_footer
      %s16 = sadd.s32 1, %s12
    $region7: #{tpu_custom_call.1} parent=1 // loop_footer_branch
      %11 = sbr.rel target = $region3
    $region8: #{tpu_custom_call.1} parent=1 // loop_exit
      _
    %449 = vsyncpa [#allocation5], 1
    %s450 = scalar_lea.sflag [#allocation5], 1
    %451 = vsyncpa %s450, 1

</llo_original>
